<compile_context>
chip_gen: v5e
topology: v5e:2x2
jax: 0.10.0
libtpu: 0.0.40
codegen_flags: <defaults>
</compile_context>

<pallas_src>
import functools

import jax
import jax.numpy as jnp
from jax import lax
from jax.experimental import pallas as pl
from jax.experimental.pallas import tpu as pltpu


def _lstm_recurrent_kernel(gx_ref, h0_ref, c0_ref, whh_ref,
                           out_ref, hn_ref, cn_ref,
                           h_sc, c_sc, *, hidden_size, ts, unroll):
    """Recurrent part of one LSTM layer.

    Grid axis 0 walks blocks of `ts` timesteps sequentially ('arbitrary').

      gx_ref : (ts, B, 4H)  precomputed  x_t @ W_ih^T + b_ih + b_hh
      h0_ref, c0_ref : (B, H)   initial state
      whh_ref : (H, 4H)         W_hh^T (resident; constant index_map)
      out_ref : (ts, B, H)      hidden states for this time block
      hn_ref, cn_ref : (B, H)   final state (written on the last block)
      h_sc, c_sc : (B, H) f32   carries, persist across grid steps
    """
    tb = pl.program_id(0)
    H = hidden_size

    @pl.when(tb == 0)
    def _init():
        h_sc[...] = h0_ref[...].astype(jnp.float32)
        c_sc[...] = c0_ref[...].astype(jnp.float32)

    whh = whh_ref[...]  # hoisted out of the time loop

    def step(s, carry):
        h, c = carry
        # gates = gates_x[t] + h_{t-1} @ W_hh^T     -> (B, 4H)
        gates = gx_ref[s].astype(jnp.float32) + jnp.dot(
            h, whh, preferred_element_type=jnp.float32)
        i_g = jax.nn.sigmoid(gates[:, 0 * H:1 * H])
        f_g = jax.nn.sigmoid(gates[:, 1 * H:2 * H])
        g_g = jnp.tanh(gates[:, 2 * H:3 * H])
        o_g = jax.nn.sigmoid(gates[:, 3 * H:4 * H])
        c_new = f_g * c + i_g * g_g
        h_new = o_g * jnp.tanh(c_new)
        out_ref[s] = h_new.astype(out_ref.dtype)
        return h_new, c_new

    h_last, c_last = lax.fori_loop(
        0, ts, step, (h_sc[...], c_sc[...]), unroll=unroll)

    h_sc[...] = h_last
    c_sc[...] = c_last

    @pl.when(tb == pl.num_programs(0) - 1)
    def _final():
        hn_ref[...] = h_last.astype(hn_ref.dtype)
        cn_ref[...] = c_last.astype(cn_ref.dtype)


def _vmem_limit_bytes(ts, B, H, itemsize):
    # Double-buffered gate + output blocks, resident weights, carries.
    blocks = 2 * ts * B * 4 * H * itemsize + 2 * ts * B * H * itemsize
    resident = H * 4 * H * itemsize + 4 * B * H * itemsize + 2 * B * H * 4
    need = blocks + resident
    # Generous headroom, but capped so it stays valid on v7x (64 MiB physical).
    return int(min(max(2 * need, 32 * 2**20), 48 * 2**20))


def _run_lstm_recurrence(gx_tm, h0, c0, w_hh, *, max_ts=128):
    """gx_tm: (S, B, 4H) precomputed input gates, time-major.

    Returns (out_tm (S,B,H), h_n (B,H), c_n (B,H)).
    """
    S, B, G = gx_tm.shape
    H = G // 4
    whh_t = jnp.transpose(w_hh)  # (H, 4H)

    # Timestep block size: largest divisor of S that is <= max_ts.
    ts = min(S, max_ts)
    while S % ts != 0:
        ts -= 1
    n_blocks = S // ts
    unroll = True if ts <= 32 else 8

    kernel = functools.partial(
        _lstm_recurrent_kernel, hidden_size=H, ts=ts, unroll=unroll)

    grid_spec = pltpu.PrefetchScalarGridSpec(
        num_scalar_prefetch=0,
        grid=(n_blocks,),
        in_specs=[
            pl.BlockSpec((ts, B, 4 * H), lambda t: (t, 0, 0)),  # gates_x block
            pl.BlockSpec((B, H), lambda t: (0, 0)),             # h0
            pl.BlockSpec((B, H), lambda t: (0, 0)),             # c0
            pl.BlockSpec((H, 4 * H), lambda t: (0, 0)),         # W_hh^T
        ],
        out_specs=[
            pl.BlockSpec((ts, B, H), lambda t: (t, 0, 0)),      # lstm_out block
            pl.BlockSpec((B, H), lambda t: (0, 0)),             # h_n
            pl.BlockSpec((B, H), lambda t: (0, 0)),             # c_n
        ],
        scratch_shapes=[
            pltpu.VMEM((B, H), jnp.float32),                    # h carry
            pltpu.VMEM((B, H), jnp.float32),                    # c carry
        ],
    )

    out, h_n, c_n = pl.pallas_call(
        kernel,
        out_shape=(
            jax.ShapeDtypeStruct((S, B, H), gx_tm.dtype),
            jax.ShapeDtypeStruct((B, H), gx_tm.dtype),
            jax.ShapeDtypeStruct((B, H), gx_tm.dtype),
        ),
        grid_spec=grid_spec,
        compiler_params=pltpu.CompilerParams(
            dimension_semantics=("arbitrary",),
            vmem_limit_bytes=_vmem_limit_bytes(
                ts, B, H, jnp.dtype(gx_tm.dtype).itemsize),
        ),
    )(gx_tm, h0, c0, whh_t)
    return out, h_n, c_n


def lstm_encoder_forward(x_input, hidden, params, *, max_ts=128):
    """Mirrors LSTMEncoder.forward.

    x_input : (batch, seq_len, input_size)  (batch_first=True)
    hidden  : (h0, c0), each (num_layers, batch, hidden_size)
    params  : list of per-layer dicts {w_ih, w_hh, b_ih, b_hh}
    Returns (lstm_out, (h_n, c_n)):
      lstm_out : (batch, seq_len, hidden_size)
      h_n, c_n : (num_layers, batch, hidden_size)
    """
    h0_all, c0_all = hidden
    B, S, _ = x_input.shape

    # Pad batch to a multiple of 8 (sublane alignment). Padded rows evolve
    # independently and are sliced away at the end.
    Bp = max(8, ((B + 7) // 8) * 8)
    pad_b = Bp - B
    if pad_b:
        x_p = jnp.pad(x_input, ((0, pad_b), (0, 0), (0, 0)))
        h0_p = jnp.pad(h0_all, ((0, 0), (0, pad_b), (0, 0)))
        c0_p = jnp.pad(c0_all, ((0, 0), (0, pad_b), (0, 0)))
    else:
        x_p, h0_p, c0_p = x_input, h0_all, c0_all

    h_ns, c_ns = [], []
    layer_in_tm = None  # time-major activations of previous layer (S, Bp, H)
    for l, p in enumerate(params):
        wih_t = jnp.transpose(p["w_ih"])                    # (in, 4H)
        bias = (p["b_ih"] + p["b_hh"]).astype(jnp.float32)  # (4H,)
        # Hoisted input projection: one large matmul over the whole sequence,
        # produced directly in time-major layout (S, Bp, 4H).
        if l == 0:
            gx = jnp.einsum("bsi,ig->sbg", x_p, wih_t,
                            preferred_element_type=jnp.float32) + bias
        else:
            gx = jnp.einsum("sbh,hg->sbg", layer_in_tm, wih_t,
                            preferred_element_type=jnp.float32) + bias

        out_tm, h_n, c_n = _run_lstm_recurrence(
            gx, h0_p[l], c0_p[l], p["w_hh"], max_ts=max_ts)
        layer_in_tm = out_tm
        h_ns.append(h_n[:B])
        c_ns.append(c_n[:B])

    # Single transpose back to batch_first at the very end.
    lstm_out = jnp.transpose(layer_in_tm[:, :B, :], (1, 0, 2))
    return lstm_out, (jnp.stack(h_ns, 0), jnp.stack(c_ns, 0))


def init_lstm_params(key, input_size, hidden_size, num_layers):
    """Deterministic init, same shapes as nn.LSTM (uniform +-1/sqrt(H))."""
    bound = 1.0 / jnp.sqrt(jnp.float32(hidden_size))
    params = []
    for l in range(num_layers):
        in_sz = input_size if l == 0 else hidden_size
        key, k1, k2, k3, k4 = jax.random.split(key, 5)
        params.append({
            "w_ih": jax.random.uniform(k1, (4 * hidden_size, in_sz),
                                       jnp.float32, -bound, bound),
            "w_hh": jax.random.uniform(k2, (4 * hidden_size, hidden_size),
                                       jnp.float32, -bound, bound),
            "b_ih": jax.random.uniform(k3, (4 * hidden_size,),
                                       jnp.float32, -bound, bound),
            "b_hh": jax.random.uniform(k4, (4 * hidden_size,),
                                       jnp.float32, -bound, bound),
        })
    return params


def _reference_lstm(x_input, hidden, params):
    """Pure-JAX reference (lax.scan) with PyTorch LSTM semantics."""
    h0_all, c0_all = hidden
    x_tm = jnp.transpose(x_input, (1, 0, 2))
    layer_in = x_tm
    h_ns, c_ns = [], []
    for l, p in enumerate(params):
        w_ih_t, w_hh_t = p["w_ih"].T, p["w_hh"].T
        bias = p["b_ih"] + p["b_hh"]
        H = p["w_hh"].shape[1]

        def step(carry, x_t):
            h, c = carry
            gates = x_t @ w_ih_t + h @ w_hh_t + bias
            i = jax.nn.sigmoid(gates[:, 0 * H:1 * H])
            f = jax.nn.sigmoid(gates[:, 1 * H:2 * H])
            g = jnp.tanh(gates[:, 2 * H:3 * H])
            o = jax.nn.sigmoid(gates[:, 3 * H:4 * H])
            c = f * c + i * g
            h = o * jnp.tanh(c)
            return (h, c), h

        (h_n, c_n), outs = jax.lax.scan(step, (h0_all[l], c0_all[l]), layer_in)
        layer_in = outs
        h_ns.append(h_n)
        c_ns.append(c_n)
    return (jnp.transpose(layer_in, (1, 0, 2)),
            (jnp.stack(h_ns, 0), jnp.stack(c_ns, 0)))


if __name__ == "__main__":
    batch = 4
    seq_len = 8
    input_size = 8
    hidden_size = 32
    num_layers = 2

    key = jax.random.PRNGKey(0)
    key, kx, kh, kc, kp = jax.random.split(key, 5)

    x = jax.random.normal(kx, (batch, seq_len, input_size), jnp.float32)
    h0 = jax.random.normal(kh, (num_layers, batch, hidden_size), jnp.float32)
    c0 = jax.random.normal(kc, (num_layers, batch, hidden_size), jnp.float32)
    params = init_lstm_params(kp, input_size, hidden_size, num_layers)

    lstm_out, (h_n, c_n) = lstm_encoder_forward(x, (h0, c0), params)
    jax.block_until_ready((lstm_out, h_n, c_n))

    ref_out, (ref_h, ref_c) = _reference_lstm(x, (h0, c0), params)
    assert jnp.allclose(lstm_out, ref_out, atol=1e-5, rtol=1e-5)
    assert jnp.allclose(h_n, ref_h, atol=1e-5, rtol=1e-5)
    assert jnp.allclose(c_n, ref_c, atol=1e-5, rtol=1e-5)

    print("KERNEL_OK")
</pallas_src>

<mosaic_0001>
module attributes {stable_mosaic.version = 11 : i64} {
  func.func @_lstm_recurrent_kernel(%arg0: i32, %arg1: memref<8x8x128xf32, #tpu.memory_space<vmem>>, %arg2: memref<8x32xf32, #tpu.memory_space<vmem>>, %arg3: memref<8x32xf32, #tpu.memory_space<vmem>>, %arg4: memref<32x128xf32, #tpu.memory_space<vmem>>, %arg5: memref<8x8x32xf32, #tpu.memory_space<vmem>>, %arg6: memref<8x32xf32, #tpu.memory_space<vmem>>, %arg7: memref<8x32xf32, #tpu.memory_space<vmem>>, %arg8: memref<8x32xf32, #tpu.memory_space<vmem>>, %arg9: memref<8x32xf32, #tpu.memory_space<vmem>>) attributes {dimension_semantics = [#tpu.dimension_semantics<arbitrary>], iteration_bounds = array<i64: 1>, scalar_prefetch = 0 : i64, scratch_operands = 2 : i64, tpu.core_type = #tpu.core_type<tc>, window_params = [{transform_indices = @transform_0, window_bounds = array<i64: 8, 8, 128>}, {pipeline_mode = #tpu.pipeline_mode<synchronous>, transform_indices = @transform_1, window_bounds = array<i64: 8, 32>}, {pipeline_mode = #tpu.pipeline_mode<synchronous>, transform_indices = @transform_2, window_bounds = array<i64: 8, 32>}, {pipeline_mode = #tpu.pipeline_mode<synchronous>, transform_indices = @transform_3, window_bounds = array<i64: 32, 128>}, {transform_indices = @transform_4, window_bounds = array<i64: 8, 8, 32>}, {pipeline_mode = #tpu.pipeline_mode<synchronous>, transform_indices = @transform_5, window_bounds = array<i64: 8, 32>}, {pipeline_mode = #tpu.pipeline_mode<synchronous>, transform_indices = @transform_6, window_bounds = array<i64: 8, 32>}]} {
    %c0_i32 = arith.constant 0 : i32
    %0 = arith.cmpi eq, %arg0, %c0_i32 : i32
    %1 = arith.extui %0 : i1 to i32
    %c0_i32_0 = arith.constant 0 : i32
    %2 = arith.cmpi ne, %1, %c0_i32_0 : i32
    scf.if %2 {
      %c0_76 = arith.constant 0 : index
      %c0_77 = arith.constant 0 : index
      %283 = vector.load %arg2[%c0_76, %c0_77] : memref<8x32xf32, #tpu.memory_space<vmem>>, vector<8x32xf32>
      %c0_78 = arith.constant 0 : index
      %c0_79 = arith.constant 0 : index
      %284 = vector.load %arg8[%c0_78, %c0_79] : memref<8x32xf32, #tpu.memory_space<vmem>>, vector<8x32xf32>
      tpu.vector_store %arg8[%c0_78, %c0_79], %283 {strides = array<i32>} : memref<8x32xf32, #tpu.memory_space<vmem>>, vector<8x32xf32>,
      %c0_80 = arith.constant 0 : index
      %c0_81 = arith.constant 0 : index
      %285 = vector.load %arg3[%c0_80, %c0_81] : memref<8x32xf32, #tpu.memory_space<vmem>>, vector<8x32xf32>
      %c0_82 = arith.constant 0 : index
      %c0_83 = arith.constant 0 : index
      %286 = vector.load %arg9[%c0_82, %c0_83] : memref<8x32xf32, #tpu.memory_space<vmem>>, vector<8x32xf32>
      tpu.vector_store %arg9[%c0_82, %c0_83], %285 {strides = array<i32>} : memref<8x32xf32, #tpu.memory_space<vmem>>, vector<8x32xf32>,
    } else {
    }
    %c0 = arith.constant 0 : index
    %c0_1 = arith.constant 0 : index
    %3 = vector.load %arg4[%c0, %c0_1] : memref<32x128xf32, #tpu.memory_space<vmem>>, vector<32x128xf32>
    %c0_2 = arith.constant 0 : index
    %c0_3 = arith.constant 0 : index
    %4 = vector.load %arg8[%c0_2, %c0_3] : memref<8x32xf32, #tpu.memory_space<vmem>>, vector<8x32xf32>
    %c0_4 = arith.constant 0 : index
    %c0_5 = arith.constant 0 : index
    %5 = vector.load %arg9[%c0_4, %c0_5] : memref<8x32xf32, #tpu.memory_space<vmem>>, vector<8x32xf32>
    %c0_i32_6 = arith.constant 0 : i32
    %6 = arith.index_cast %c0_i32_6 : i32 to index
    %c0_7 = arith.constant 0 : index
    %c0_8 = arith.constant 0 : index
    %7 = vector.load %arg1[%6, %c0_7, %c0_8] : memref<8x8x128xf32, #tpu.memory_space<vmem>>, vector<1x8x128xf32>
    %8 = vector.shape_cast %7 : vector<1x8x128xf32> to vector<8x128xf32>
    %cst = arith.constant dense<0.000000e+00> : vector<8x128xf32>
    %9 = tpu.matmul %4, %3, %cst {dimension_numbers = #tpu.dot_dimension_numbers<[1], [0], [0], [1], [0, 0, 1, 1], [], []>} : vector<8x32xf32>, vector<32x128xf32>, vector<8x128xf32> -> vector<8x128xf32>
    %10 = arith.addf %8, %9 : vector<8x128xf32>
    %11 = vector.extract_strided_slice %10 {offsets = [0, 0], sizes = [8, 32], strides = [1, 1]} : vector<8x128xf32> to vector<8x32xf32>
    %12 = arith.negf %11 : vector<8x32xf32>
    %13 = math.exp %12 : vector<8x32xf32>
    %cst_9 = arith.constant 1.000000e+00 : f32
    %14 = vector.broadcast %cst_9 : f32 to vector<8x32xf32>
    %15 = arith.addf %14, %13 : vector<8x32xf32>
    %16 = arith.divf %14, %15 : vector<8x32xf32>
    %17 = vector.extract_strided_slice %10 {offsets = [0, 32], sizes = [8, 32], strides = [1, 1]} : vector<8x128xf32> to vector<8x32xf32>
    %18 = arith.negf %17 : vector<8x32xf32>
    %19 = math.exp %18 : vector<8x32xf32>
    %cst_10 = arith.constant 1.000000e+00 : f32
    %20 = vector.broadcast %cst_10 : f32 to vector<8x32xf32>
    %21 = arith.addf %20, %19 : vector<8x32xf32>
    %22 = arith.divf %20, %21 : vector<8x32xf32>
    %23 = vector.extract_strided_slice %10 {offsets = [0, 64], sizes = [8, 32], strides = [1, 1]} : vector<8x128xf32> to vector<8x32xf32>
    %24 = math.tanh %23 : vector<8x32xf32>
    %25 = vector.extract_strided_slice %10 {offsets = [0, 96], sizes = [8, 32], strides = [1, 1]} : vector<8x128xf32> to vector<8x32xf32>
    %26 = arith.negf %25 : vector<8x32xf32>
    %27 = math.exp %26 : vector<8x32xf32>
    %cst_11 = arith.constant 1.000000e+00 : f32
    %28 = vector.broadcast %cst_11 : f32 to vector<8x32xf32>
    %29 = arith.addf %28, %27 : vector<8x32xf32>
    %30 = arith.divf %28, %29 : vector<8x32xf32>
    %31 = arith.mulf %22, %5 : vector<8x32xf32>
    %32 = arith.mulf %16, %24 : vector<8x32xf32>
    %33 = arith.addf %31, %32 : vector<8x32xf32>
    %34 = math.tanh %33 : vector<8x32xf32>
    %35 = arith.mulf %30, %34 : vector<8x32xf32>
    %36 = arith.index_cast %c0_i32_6 : i32 to index
    %c0_12 = arith.constant 0 : index
    %c0_13 = arith.constant 0 : index
    %37 = vector.load %arg5[%36, %c0_12, %c0_13] : memref<8x8x32xf32, #tpu.memory_space<vmem>>, vector<1x8x32xf32>
    %38 = vector.shape_cast %37 : vector<1x8x32xf32> to vector<8x32xf32>
    %39 = vector.shape_cast %35 : vector<8x32xf32> to vector<1x8x32xf32>
    tpu.vector_store %arg5[%36, %c0_12, %c0_13], %39 {strides = array<i32>} : memref<8x8x32xf32, #tpu.memory_space<vmem>>, vector<1x8x32xf32>,
    %c1_i32 = arith.constant 1 : i32
    %40 = arith.index_cast %c1_i32 : i32 to index
    %c0_14 = arith.constant 0 : index
    %c0_15 = arith.constant 0 : index
    %41 = vector.load %arg1[%40, %c0_14, %c0_15] : memref<8x8x128xf32, #tpu.memory_space<vmem>>, vector<1x8x128xf32>
    %42 = vector.shape_cast %41 : vector<1x8x128xf32> to vector<8x128xf32>
    %cst_16 = arith.constant dense<0.000000e+00> : vector<8x128xf32>
    %43 = tpu.matmul %35, %3, %cst_16 {dimension_numbers = #tpu.dot_dimension_numbers<[1], [0], [0], [1], [0, 0, 1, 1], [], []>} : vector<8x32xf32>, vector<32x128xf32>, vector<8x128xf32> -> vector<8x128xf32>
    %44 = arith.addf %42, %43 : vector<8x128xf32>
    %45 = vector.extract_strided_slice %44 {offsets = [0, 0], sizes = [8, 32], strides = [1, 1]} : vector<8x128xf32> to vector<8x32xf32>
    %46 = arith.negf %45 : vector<8x32xf32>
    %47 = math.exp %46 : vector<8x32xf32>
    %cst_17 = arith.constant 1.000000e+00 : f32
    %48 = vector.broadcast %cst_17 : f32 to vector<8x32xf32>
    %49 = arith.addf %48, %47 : vector<8x32xf32>
    %50 = arith.divf %48, %49 : vector<8x32xf32>
    %51 = vector.extract_strided_slice %44 {offsets = [0, 32], sizes = [8, 32], strides = [1, 1]} : vector<8x128xf32> to vector<8x32xf32>
    %52 = arith.negf %51 : vector<8x32xf32>
    %53 = math.exp %52 : vector<8x32xf32>
    %cst_18 = arith.constant 1.000000e+00 : f32
    %54 = vector.broadcast %cst_18 : f32 to vector<8x32xf32>
    %55 = arith.addf %54, %53 : vector<8x32xf32>
    %56 = arith.divf %54, %55 : vector<8x32xf32>
    %57 = vector.extract_strided_slice %44 {offsets = [0, 64], sizes = [8, 32], strides = [1, 1]} : vector<8x128xf32> to vector<8x32xf32>
    %58 = math.tanh %57 : vector<8x32xf32>
    %59 = vector.extract_strided_slice %44 {offsets = [0, 96], sizes = [8, 32], strides = [1, 1]} : vector<8x128xf32> to vector<8x32xf32>
    %60 = arith.negf %59 : vector<8x32xf32>
    %61 = math.exp %60 : vector<8x32xf32>
    %cst_19 = arith.constant 1.000000e+00 : f32
    %62 = vector.broadcast %cst_19 : f32 to vector<8x32xf32>
    %63 = arith.addf %62, %61 : vector<8x32xf32>
    %64 = arith.divf %62, %63 : vector<8x32xf32>
    %65 = arith.mulf %56, %33 : vector<8x32xf32>
    %66 = arith.mulf %50, %58 : vector<8x32xf32>
    %67 = arith.addf %65, %66 : vector<8x32xf32>
    %68 = math.tanh %67 : vector<8x32xf32>
    %69 = arith.mulf %64, %68 : vector<8x32xf32>
    %70 = arith.index_cast %c1_i32 : i32 to index
    %c0_20 = arith.constant 0 : index
    %c0_21 = arith.constant 0 : index
    %71 = vector.load %arg5[%70, %c0_20, %c0_21] : memref<8x8x32xf32, #tpu.memory_space<vmem>>, vector<1x8x32xf32>
    %72 = vector.shape_cast %71 : vector<1x8x32xf32> to vector<8x32xf32>
    %73 = vector.shape_cast %69 : vector<8x32xf32> to vector<1x8x32xf32>
    tpu.vector_store %arg5[%70, %c0_20, %c0_21], %73 {strides = array<i32>} : memref<8x8x32xf32, #tpu.memory_space<vmem>>, vector<1x8x32xf32>,
    %c2_i32 = arith.constant 2 : i32
    %74 = arith.index_cast %c2_i32 : i32 to index
    %c0_22 = arith.constant 0 : index
    %c0_23 = arith.constant 0 : index
    %75 = vector.load %arg1[%74, %c0_22, %c0_23] : memref<8x8x128xf32, #tpu.memory_space<vmem>>, vector<1x8x128xf32>
    %76 = vector.shape_cast %75 : vector<1x8x128xf32> to vector<8x128xf32>
    %cst_24 = arith.constant dense<0.000000e+00> : vector<8x128xf32>
    %77 = tpu.matmul %69, %3, %cst_24 {dimension_numbers = #tpu.dot_dimension_numbers<[1], [0], [0], [1], [0, 0, 1, 1], [], []>} : vector<8x32xf32>, vector<32x128xf32>, vector<8x128xf32> -> vector<8x128xf32>
    %78 = arith.addf %76, %77 : vector<8x128xf32>
    %79 = vector.extract_strided_slice %78 {offsets = [0, 0], sizes = [8, 32], strides = [1, 1]} : vector<8x128xf32> to vector<8x32xf32>
    %80 = arith.negf %79 : vector<8x32xf32>
    %81 = math.exp %80 : vector<8x32xf32>
    %cst_25 = arith.constant 1.000000e+00 : f32
    %82 = vector.broadcast %cst_25 : f32 to vector<8x32xf32>
    %83 = arith.addf %82, %81 : vector<8x32xf32>
    %84 = arith.divf %82, %83 : vector<8x32xf32>
    %85 = vector.extract_strided_slice %78 {offsets = [0, 32], sizes = [8, 32], strides = [1, 1]} : vector<8x128xf32> to vector<8x32xf32>
    %86 = arith.negf %85 : vector<8x32xf32>
    %87 = math.exp %86 : vector<8x32xf32>
    %cst_26 = arith.constant 1.000000e+00 : f32
    %88 = vector.broadcast %cst_26 : f32 to vector<8x32xf32>
    %89 = arith.addf %88, %87 : vector<8x32xf32>
    %90 = arith.divf %88, %89 : vector<8x32xf32>
    %91 = vector.extract_strided_slice %78 {offsets = [0, 64], sizes = [8, 32], strides = [1, 1]} : vector<8x128xf32> to vector<8x32xf32>
    %92 = math.tanh %91 : vector<8x32xf32>
    %93 = vector.extract_strided_slice %78 {offsets = [0, 96], sizes = [8, 32], strides = [1, 1]} : vector<8x128xf32> to vector<8x32xf32>
    %94 = arith.negf %93 : vector<8x32xf32>
    %95 = math.exp %94 : vector<8x32xf32>
    %cst_27 = arith.constant 1.000000e+00 : f32
    %96 = vector.broadcast %cst_27 : f32 to vector<8x32xf32>
    %97 = arith.addf %96, %95 : vector<8x32xf32>
    %98 = arith.divf %96, %97 : vector<8x32xf32>
    %99 = arith.mulf %90, %67 : vector<8x32xf32>
    %100 = arith.mulf %84, %92 : vector<8x32xf32>
    %101 = arith.addf %99, %100 : vector<8x32xf32>
    %102 = math.tanh %101 : vector<8x32xf32>
    %103 = arith.mulf %98, %102 : vector<8x32xf32>
    %104 = arith.index_cast %c2_i32 : i32 to index
    %c0_28 = arith.constant 0 : index
    %c0_29 = arith.constant 0 : index
    %105 = vector.load %arg5[%104, %c0_28, %c0_29] : memref<8x8x32xf32, #tpu.memory_space<vmem>>, vector<1x8x32xf32>
    %106 = vector.shape_cast %105 : vector<1x8x32xf32> to vector<8x32xf32>
    %107 = vector.shape_cast %103 : vector<8x32xf32> to vector<1x8x32xf32>
    tpu.vector_store %arg5[%104, %c0_28, %c0_29], %107 {strides = array<i32>} : memref<8x8x32xf32, #tpu.memory_space<vmem>>, vector<1x8x32xf32>,
    %c3_i32 = arith.constant 3 : i32
    %108 = arith.index_cast %c3_i32 : i32 to index
    %c0_30 = arith.constant 0 : index
    %c0_31 = arith.constant 0 : index
    %109 = vector.load %arg1[%108, %c0_30, %c0_31] : memref<8x8x128xf32, #tpu.memory_space<vmem>>, vector<1x8x128xf32>
    %110 = vector.shape_cast %109 : vector<1x8x128xf32> to vector<8x128xf32>
    %cst_32 = arith.constant dense<0.000000e+00> : vector<8x128xf32>
    %111 = tpu.matmul %103, %3, %cst_32 {dimension_numbers = #tpu.dot_dimension_numbers<[1], [0], [0], [1], [0, 0, 1, 1], [], []>} : vector<8x32xf32>, vector<32x128xf32>, vector<8x128xf32> -> vector<8x128xf32>
    %112 = arith.addf %110, %111 : vector<8x128xf32>
    %113 = vector.extract_strided_slice %112 {offsets = [0, 0], sizes = [8, 32], strides = [1, 1]} : vector<8x128xf32> to vector<8x32xf32>
    %114 = arith.negf %113 : vector<8x32xf32>
    %115 = math.exp %114 : vector<8x32xf32>
    %cst_33 = arith.constant 1.000000e+00 : f32
    %116 = vector.broadcast %cst_33 : f32 to vector<8x32xf32>
    %117 = arith.addf %116, %115 : vector<8x32xf32>
    %118 = arith.divf %116, %117 : vector<8x32xf32>
    %119 = vector.extract_strided_slice %112 {offsets = [0, 32], sizes = [8, 32], strides = [1, 1]} : vector<8x128xf32> to vector<8x32xf32>
    %120 = arith.negf %119 : vector<8x32xf32>
    %121 = math.exp %120 : vector<8x32xf32>
    %cst_34 = arith.constant 1.000000e+00 : f32
    %122 = vector.broadcast %cst_34 : f32 to vector<8x32xf32>
    %123 = arith.addf %122, %121 : vector<8x32xf32>
    %124 = arith.divf %122, %123 : vector<8x32xf32>
    %125 = vector.extract_strided_slice %112 {offsets = [0, 64], sizes = [8, 32], strides = [1, 1]} : vector<8x128xf32> to vector<8x32xf32>
    %126 = math.tanh %125 : vector<8x32xf32>
    %127 = vector.extract_strided_slice %112 {offsets = [0, 96], sizes = [8, 32], strides = [1, 1]} : vector<8x128xf32> to vector<8x32xf32>
    %128 = arith.negf %127 : vector<8x32xf32>
    %129 = math.exp %128 : vector<8x32xf32>
    %cst_35 = arith.constant 1.000000e+00 : f32
    %130 = vector.broadcast %cst_35 : f32 to vector<8x32xf32>
    %131 = arith.addf %130, %129 : vector<8x32xf32>
    %132 = arith.divf %130, %131 : vector<8x32xf32>
    %133 = arith.mulf %124, %101 : vector<8x32xf32>
    %134 = arith.mulf %118, %126 : vector<8x32xf32>
    %135 = arith.addf %133, %134 : vector<8x32xf32>
    %136 = math.tanh %135 : vector<8x32xf32>
    %137 = arith.mulf %132, %136 : vector<8x32xf32>
    %138 = arith.index_cast %c3_i32 : i32 to index
    %c0_36 = arith.constant 0 : index
    %c0_37 = arith.constant 0 : index
    %139 = vector.load %arg5[%138, %c0_36, %c0_37] : memref<8x8x32xf32, #tpu.memory_space<vmem>>, vector<1x8x32xf32>
    %140 = vector.shape_cast %139 : vector<1x8x32xf32> to vector<8x32xf32>
    %141 = vector.shape_cast %137 : vector<8x32xf32> to vector<1x8x32xf32>
    tpu.vector_store %arg5[%138, %c0_36, %c0_37], %141 {strides = array<i32>} : memref<8x8x32xf32, #tpu.memory_space<vmem>>, vector<1x8x32xf32>,
    %c4_i32 = arith.constant 4 : i32
    %142 = arith.index_cast %c4_i32 : i32 to index
    %c0_38 = arith.constant 0 : index
    %c0_39 = arith.constant 0 : index
    %143 = vector.load %arg1[%142, %c0_38, %c0_39] : memref<8x8x128xf32, #tpu.memory_space<vmem>>, vector<1x8x128xf32>
    %144 = vector.shape_cast %143 : vector<1x8x128xf32> to vector<8x128xf32>
    %cst_40 = arith.constant dense<0.000000e+00> : vector<8x128xf32>
    %145 = tpu.matmul %137, %3, %cst_40 {dimension_numbers = #tpu.dot_dimension_numbers<[1], [0], [0], [1], [0, 0, 1, 1], [], []>} : vector<8x32xf32>, vector<32x128xf32>, vector<8x128xf32> -> vector<8x128xf32>
    %146 = arith.addf %144, %145 : vector<8x128xf32>
    %147 = vector.extract_strided_slice %146 {offsets = [0, 0], sizes = [8, 32], strides = [1, 1]} : vector<8x128xf32> to vector<8x32xf32>
    %148 = arith.negf %147 : vector<8x32xf32>
    %149 = math.exp %148 : vector<8x32xf32>
    %cst_41 = arith.constant 1.000000e+00 : f32
    %150 = vector.broadcast %cst_41 : f32 to vector<8x32xf32>
    %151 = arith.addf %150, %149 : vector<8x32xf32>
    %152 = arith.divf %150, %151 : vector<8x32xf32>
    %153 = vector.extract_strided_slice %146 {offsets = [0, 32], sizes = [8, 32], strides = [1, 1]} : vector<8x128xf32> to vector<8x32xf32>
    %154 = arith.negf %153 : vector<8x32xf32>
    %155 = math.exp %154 : vector<8x32xf32>
    %cst_42 = arith.constant 1.000000e+00 : f32
    %156 = vector.broadcast %cst_42 : f32 to vector<8x32xf32>
    %157 = arith.addf %156, %155 : vector<8x32xf32>
    %158 = arith.divf %156, %157 : vector<8x32xf32>
    %159 = vector.extract_strided_slice %146 {offsets = [0, 64], sizes = [8, 32], strides = [1, 1]} : vector<8x128xf32> to vector<8x32xf32>
    %160 = math.tanh %159 : vector<8x32xf32>
    %161 = vector.extract_strided_slice %146 {offsets = [0, 96], sizes = [8, 32], strides = [1, 1]} : vector<8x128xf32> to vector<8x32xf32>
    %162 = arith.negf %161 : vector<8x32xf32>
    %163 = math.exp %162 : vector<8x32xf32>
    %cst_43 = arith.constant 1.000000e+00 : f32
    %164 = vector.broadcast %cst_43 : f32 to vector<8x32xf32>
    %165 = arith.addf %164, %163 : vector<8x32xf32>
    %166 = arith.divf %164, %165 : vector<8x32xf32>
    %167 = arith.mulf %158, %135 : vector<8x32xf32>
    %168 = arith.mulf %152, %160 : vector<8x32xf32>
    %169 = arith.addf %167, %168 : vector<8x32xf32>
    %170 = math.tanh %169 : vector<8x32xf32>
    %171 = arith.mulf %166, %170 : vector<8x32xf32>
    %172 = arith.index_cast %c4_i32 : i32 to index
    %c0_44 = arith.constant 0 : index
    %c0_45 = arith.constant 0 : index
    %173 = vector.load %arg5[%172, %c0_44, %c0_45] : memref<8x8x32xf32, #tpu.memory_space<vmem>>, vector<1x8x32xf32>
    %174 = vector.shape_cast %173 : vector<1x8x32xf32> to vector<8x32xf32>
    %175 = vector.shape_cast %171 : vector<8x32xf32> to vector<1x8x32xf32>
    tpu.vector_store %arg5[%172, %c0_44, %c0_45], %175 {strides = array<i32>} : memref<8x8x32xf32, #tpu.memory_space<vmem>>, vector<1x8x32xf32>,
    %c5_i32 = arith.constant 5 : i32
    %176 = arith.index_cast %c5_i32 : i32 to index
    %c0_46 = arith.constant 0 : index
    %c0_47 = arith.constant 0 : index
    %177 = vector.load %arg1[%176, %c0_46, %c0_47] : memref<8x8x128xf32, #tpu.memory_space<vmem>>, vector<1x8x128xf32>
    %178 = vector.shape_cast %177 : vector<1x8x128xf32> to vector<8x128xf32>
    %cst_48 = arith.constant dense<0.000000e+00> : vector<8x128xf32>
    %179 = tpu.matmul %171, %3, %cst_48 {dimension_numbers = #tpu.dot_dimension_numbers<[1], [0], [0], [1], [0, 0, 1, 1], [], []>} : vector<8x32xf32>, vector<32x128xf32>, vector<8x128xf32> -> vector<8x128xf32>
    %180 = arith.addf %178, %179 : vector<8x128xf32>
    %181 = vector.extract_strided_slice %180 {offsets = [0, 0], sizes = [8, 32], strides = [1, 1]} : vector<8x128xf32> to vector<8x32xf32>
    %182 = arith.negf %181 : vector<8x32xf32>
    %183 = math.exp %182 : vector<8x32xf32>
    %cst_49 = arith.constant 1.000000e+00 : f32
    %184 = vector.broadcast %cst_49 : f32 to vector<8x32xf32>
    %185 = arith.addf %184, %183 : vector<8x32xf32>
    %186 = arith.divf %184, %185 : vector<8x32xf32>
    %187 = vector.extract_strided_slice %180 {offsets = [0, 32], sizes = [8, 32], strides = [1, 1]} : vector<8x128xf32> to vector<8x32xf32>
    %188 = arith.negf %187 : vector<8x32xf32>
    %189 = math.exp %188 : vector<8x32xf32>
    %cst_50 = arith.constant 1.000000e+00 : f32
    %190 = vector.broadcast %cst_50 : f32 to vector<8x32xf32>
    %191 = arith.addf %190, %189 : vector<8x32xf32>
    %192 = arith.divf %190, %191 : vector<8x32xf32>
    %193 = vector.extract_strided_slice %180 {offsets = [0, 64], sizes = [8, 32], strides = [1, 1]} : vector<8x128xf32> to vector<8x32xf32>
    %194 = math.tanh %193 : vector<8x32xf32>
    %195 = vector.extract_strided_slice %180 {offsets = [0, 96], sizes = [8, 32], strides = [1, 1]} : vector<8x128xf32> to vector<8x32xf32>
    %196 = arith.negf %195 : vector<8x32xf32>
    %197 = math.exp %196 : vector<8x32xf32>
    %cst_51 = arith.constant 1.000000e+00 : f32
    %198 = vector.broadcast %cst_51 : f32 to vector<8x32xf32>
    %199 = arith.addf %198, %197 : vector<8x32xf32>
    %200 = arith.divf %198, %199 : vector<8x32xf32>
    %201 = arith.mulf %192, %169 : vector<8x32xf32>
    %202 = arith.mulf %186, %194 : vector<8x32xf32>
    %203 = arith.addf %201, %202 : vector<8x32xf32>
    %204 = math.tanh %203 : vector<8x32xf32>
    %205 = arith.mulf %200, %204 : vector<8x32xf32>
    %206 = arith.index_cast %c5_i32 : i32 to index
    %c0_52 = arith.constant 0 : index
    %c0_53 = arith.constant 0 : index
    %207 = vector.load %arg5[%206, %c0_52, %c0_53] : memref<8x8x32xf32, #tpu.memory_space<vmem>>, vector<1x8x32xf32>
    %208 = vector.shape_cast %207 : vector<1x8x32xf32> to vector<8x32xf32>
    %209 = vector.shape_cast %205 : vector<8x32xf32> to vector<1x8x32xf32>
    tpu.vector_store %arg5[%206, %c0_52, %c0_53], %209 {strides = array<i32>} : memref<8x8x32xf32, #tpu.memory_space<vmem>>, vector<1x8x32xf32>,
    %c6_i32 = arith.constant 6 : i32
    %210 = arith.index_cast %c6_i32 : i32 to index
    %c0_54 = arith.constant 0 : index
    %c0_55 = arith.constant 0 : index
    %211 = vector.load %arg1[%210, %c0_54, %c0_55] : memref<8x8x128xf32, #tpu.memory_space<vmem>>, vector<1x8x128xf32>
    %212 = vector.shape_cast %211 : vector<1x8x128xf32> to vector<8x128xf32>
    %cst_56 = arith.constant dense<0.000000e+00> : vector<8x128xf32>
    %213 = tpu.matmul %205, %3, %cst_56 {dimension_numbers = #tpu.dot_dimension_numbers<[1], [0], [0], [1], [0, 0, 1, 1], [], []>} : vector<8x32xf32>, vector<32x128xf32>, vector<8x128xf32> -> vector<8x128xf32>
    %214 = arith.addf %212, %213 : vector<8x128xf32>
    %215 = vector.extract_strided_slice %214 {offsets = [0, 0], sizes = [8, 32], strides = [1, 1]} : vector<8x128xf32> to vector<8x32xf32>
    %216 = arith.negf %215 : vector<8x32xf32>
    %217 = math.exp %216 : vector<8x32xf32>
    %cst_57 = arith.constant 1.000000e+00 : f32
    %218 = vector.broadcast %cst_57 : f32 to vector<8x32xf32>
    %219 = arith.addf %218, %217 : vector<8x32xf32>
    %220 = arith.divf %218, %219 : vector<8x32xf32>
    %221 = vector.extract_strided_slice %214 {offsets = [0, 32], sizes = [8, 32], strides = [1, 1]} : vector<8x128xf32> to vector<8x32xf32>
    %222 = arith.negf %221 : vector<8x32xf32>
    %223 = math.exp %222 : vector<8x32xf32>
    %cst_58 = arith.constant 1.000000e+00 : f32
    %224 = vector.broadcast %cst_58 : f32 to vector<8x32xf32>
    %225 = arith.addf %224, %223 : vector<8x32xf32>
    %226 = arith.divf %224, %225 : vector<8x32xf32>
    %227 = vector.extract_strided_slice %214 {offsets = [0, 64], sizes = [8, 32], strides = [1, 1]} : vector<8x128xf32> to vector<8x32xf32>
    %228 = math.tanh %227 : vector<8x32xf32>
    %229 = vector.extract_strided_slice %214 {offsets = [0, 96], sizes = [8, 32], strides = [1, 1]} : vector<8x128xf32> to vector<8x32xf32>
    %230 = arith.negf %229 : vector<8x32xf32>
    %231 = math.exp %230 : vector<8x32xf32>
    %cst_59 = arith.constant 1.000000e+00 : f32
    %232 = vector.broadcast %cst_59 : f32 to vector<8x32xf32>
    %233 = arith.addf %232, %231 : vector<8x32xf32>
    %234 = arith.divf %232, %233 : vector<8x32xf32>
    %235 = arith.mulf %226, %203 : vector<8x32xf32>
    %236 = arith.mulf %220, %228 : vector<8x32xf32>
    %237 = arith.addf %235, %236 : vector<8x32xf32>
    %238 = math.tanh %237 : vector<8x32xf32>
    %239 = arith.mulf %234, %238 : vector<8x32xf32>
    %240 = arith.index_cast %c6_i32 : i32 to index
    %c0_60 = arith.constant 0 : index
    %c0_61 = arith.constant 0 : index
    %241 = vector.load %arg5[%240, %c0_60, %c0_61] : memref<8x8x32xf32, #tpu.memory_space<vmem>>, vector<1x8x32xf32>
    %242 = vector.shape_cast %241 : vector<1x8x32xf32> to vector<8x32xf32>
    %243 = vector.shape_cast %239 : vector<8x32xf32> to vector<1x8x32xf32>
    tpu.vector_store %arg5[%240, %c0_60, %c0_61], %243 {strides = array<i32>} : memref<8x8x32xf32, #tpu.memory_space<vmem>>, vector<1x8x32xf32>,
    %c7_i32 = arith.constant 7 : i32
    %244 = arith.index_cast %c7_i32 : i32 to index
    %c0_62 = arith.constant 0 : index
    %c0_63 = arith.constant 0 : index
    %245 = vector.load %arg1[%244, %c0_62, %c0_63] : memref<8x8x128xf32, #tpu.memory_space<vmem>>, vector<1x8x128xf32>
    %246 = vector.shape_cast %245 : vector<1x8x128xf32> to vector<8x128xf32>
    %cst_64 = arith.constant dense<0.000000e+00> : vector<8x128xf32>
    %247 = tpu.matmul %239, %3, %cst_64 {dimension_numbers = #tpu.dot_dimension_numbers<[1], [0], [0], [1], [0, 0, 1, 1], [], []>} : vector<8x32xf32>, vector<32x128xf32>, vector<8x128xf32> -> vector<8x128xf32>
    %248 = arith.addf %246, %247 : vector<8x128xf32>
    %249 = vector.extract_strided_slice %248 {offsets = [0, 0], sizes = [8, 32], strides = [1, 1]} : vector<8x128xf32> to vector<8x32xf32>
    %250 = arith.negf %249 : vector<8x32xf32>
    %251 = math.exp %250 : vector<8x32xf32>
    %cst_65 = arith.constant 1.000000e+00 : f32
    %252 = vector.broadcast %cst_65 : f32 to vector<8x32xf32>
    %253 = arith.addf %252, %251 : vector<8x32xf32>
    %254 = arith.divf %252, %253 : vector<8x32xf32>
    %255 = vector.extract_strided_slice %248 {offsets = [0, 32], sizes = [8, 32], strides = [1, 1]} : vector<8x128xf32> to vector<8x32xf32>
    %256 = arith.negf %255 : vector<8x32xf32>
    %257 = math.exp %256 : vector<8x32xf32>
    %cst_66 = arith.constant 1.000000e+00 : f32
    %258 = vector.broadcast %cst_66 : f32 to vector<8x32xf32>
    %259 = arith.addf %258, %257 : vector<8x32xf32>
    %260 = arith.divf %258, %259 : vector<8x32xf32>
    %261 = vector.extract_strided_slice %248 {offsets = [0, 64], sizes = [8, 32], strides = [1, 1]} : vector<8x128xf32> to vector<8x32xf32>
    %262 = math.tanh %261 : vector<8x32xf32>
    %263 = vector.extract_strided_slice %248 {offsets = [0, 96], sizes = [8, 32], strides = [1, 1]} : vector<8x128xf32> to vector<8x32xf32>
    %264 = arith.negf %263 : vector<8x32xf32>
    %265 = math.exp %264 : vector<8x32xf32>
    %cst_67 = arith.constant 1.000000e+00 : f32
    %266 = vector.broadcast %cst_67 : f32 to vector<8x32xf32>
    %267 = arith.addf %266, %265 : vector<8x32xf32>
    %268 = arith.divf %266, %267 : vector<8x32xf32>
    %269 = arith.mulf %260, %237 : vector<8x32xf32>
    %270 = arith.mulf %254, %262 : vector<8x32xf32>
    %271 = arith.addf %269, %270 : vector<8x32xf32>
    %272 = math.tanh %271 : vector<8x32xf32>
    %273 = arith.mulf %268, %272 : vector<8x32xf32>
    %274 = arith.index_cast %c7_i32 : i32 to index
    %c0_68 = arith.constant 0 : index
    %c0_69 = arith.constant 0 : index
    %275 = vector.load %arg5[%274, %c0_68, %c0_69] : memref<8x8x32xf32, #tpu.memory_space<vmem>>, vector<1x8x32xf32>
    %276 = vector.shape_cast %275 : vector<1x8x32xf32> to vector<8x32xf32>
    %277 = vector.shape_cast %273 : vector<8x32xf32> to vector<1x8x32xf32>
    tpu.vector_store %arg5[%274, %c0_68, %c0_69], %277 {strides = array<i32>} : memref<8x8x32xf32, #tpu.memory_space<vmem>>, vector<1x8x32xf32>,
    %c8_i32 = arith.constant 8 : i32
    %c0_70 = arith.constant 0 : index
    %c0_71 = arith.constant 0 : index
    %278 = vector.load %arg8[%c0_70, %c0_71] : memref<8x32xf32, #tpu.memory_space<vmem>>, vector<8x32xf32>
    tpu.vector_store %arg8[%c0_70, %c0_71], %273 {strides = array<i32>} : memref<8x32xf32, #tpu.memory_space<vmem>>, vector<8x32xf32>,
    %c0_72 = arith.constant 0 : index
    %c0_73 = arith.constant 0 : index
    %279 = vector.load %arg9[%c0_72, %c0_73] : memref<8x32xf32, #tpu.memory_space<vmem>>, vector<8x32xf32>
    tpu.vector_store %arg9[%c0_72, %c0_73], %271 {strides = array<i32>} : memref<8x32xf32, #tpu.memory_space<vmem>>, vector<8x32xf32>,
    %c0_i32_74 = arith.constant 0 : i32
    %280 = arith.cmpi eq, %arg0, %c0_i32_74 : i32
    %281 = arith.extui %280 : i1 to i32
    %c0_i32_75 = arith.constant 0 : i32
    %282 = arith.cmpi ne, %281, %c0_i32_75 : i32
    scf.if %282 {
      %c0_76 = arith.constant 0 : index
      %c0_77 = arith.constant 0 : index
      %283 = vector.load %arg6[%c0_76, %c0_77] : memref<8x32xf32, #tpu.memory_space<vmem>>, vector<8x32xf32>
      tpu.vector_store %arg6[%c0_76, %c0_77], %273 {strides = array<i32>} : memref<8x32xf32, #tpu.memory_space<vmem>>, vector<8x32xf32>,
      %c0_78 = arith.constant 0 : index
      %c0_79 = arith.constant 0 : index
      %284 = vector.load %arg7[%c0_78, %c0_79] : memref<8x32xf32, #tpu.memory_space<vmem>>, vector<8x32xf32>
      tpu.vector_store %arg7[%c0_78, %c0_79], %271 {strides = array<i32>} : memref<8x32xf32, #tpu.memory_space<vmem>>, vector<8x32xf32>,
    } else {
    }
    return
  }
  func.func @transform_0(%arg0: i32) -> (i32, i32, i32) {
    %c0_i32 = arith.constant 0 : i32
    %c0_i32_0 = arith.constant 0 : i32
    %c0_i32_1 = arith.constant 0 : i32
    return %arg0, %c0_i32, %c0_i32_0 : i32, i32, i32
  }
  func.func @transform_1(%arg0: i32) -> (i32, i32) {
    %c0_i32 = arith.constant 0 : i32
    %c0_i32_0 = arith.constant 0 : i32
    %c0_i32_1 = arith.constant 0 : i32
    return %c0_i32, %c0_i32_0 : i32, i32
  }
  func.func @transform_2(%arg0: i32) -> (i32, i32) {
    %c0_i32 = arith.constant 0 : i32
    %c0_i32_0 = arith.constant 0 : i32
    %c0_i32_1 = arith.constant 0 : i32
    return %c0_i32, %c0_i32_0 : i32, i32
  }
  func.func @transform_3(%arg0: i32) -> (i32, i32) {
    %c0_i32 = arith.constant 0 : i32
    %c0_i32_0 = arith.constant 0 : i32
    %c0_i32_1 = arith.constant 0 : i32
    return %c0_i32, %c0_i32_0 : i32, i32
  }
  func.func @transform_4(%arg0: i32) -> (i32, i32, i32) {
    %c0_i32 = arith.constant 0 : i32
    %c0_i32_0 = arith.constant 0 : i32
    %c0_i32_1 = arith.constant 0 : i32
    return %arg0, %c0_i32, %c0_i32_0 : i32, i32, i32
  }
  func.func @transform_5(%arg0: i32) -> (i32, i32) {
    %c0_i32 = arith.constant 0 : i32
    %c0_i32_0 = arith.constant 0 : i32
    %c0_i32_1 = arith.constant 0 : i32
    return %c0_i32, %c0_i32_0 : i32, i32
  }
  func.func @transform_6(%arg0: i32) -> (i32, i32) {
    %c0_i32 = arith.constant 0 : i32
    %c0_i32_0 = arith.constant 0 : i32
    %c0_i32_1 = arith.constant 0 : i32
    return %c0_i32, %c0_i32_0 : i32, i32
  }
}

</mosaic_0001>

<llo_original>
// kernel: tpu_custom_call.1
$region0: #{tpu_custom_call.1}
  #allocation0 [shape = 'u32[]', space=smem, size = 0x4, offset = 0x4, fixed_abs, tag = 'smem constant byte address 0x4 - core index']
  #allocation1 [shape = 'u32[72,128]{1,0:T(1,128)}', space=vmem, size = 0x9000, scoped, tag = 'internal scratch']
  #allocation2 [shape = 'f32[8,32]{1,0:T(8,128)}', space=vmem, size = 0x1000, scoped, tag = 'scratch operand']
  #allocation3 [shape = 'f32[8,32]{1,0:T(8,128)}', space=vmem, size = 0x1000, scoped, tag = 'scratch operand']
  %s0 = inlined_call_operand.hbm [shape: f32[8,8,128], index: 0, kind: input, shape index: {}]
  %s1 = inlined_call_operand.hbm [shape: f32[8,32], index: 1, kind: input, shape index: {}]
  %s2 = inlined_call_operand.hbm [shape: f32[8,32], index: 2, kind: input, shape index: {}]
  %s3 = inlined_call_operand.hbm [shape: f32[32,128], index: 3, kind: input, shape index: {}]
  %s4 = inlined_call_operand.hbm [shape: f32[8,8,32], index: 4, kind: output, shape index: {0}]
  %s5 = inlined_call_operand.hbm [shape: f32[8,32], index: 5, kind: output, shape index: {1}]
  %s6 = inlined_call_operand.hbm [shape: f32[8,32], index: 6, kind: output, shape index: {2}]
  %7 = xla_tuple %s4, %s5, %s6
  %s8 = sld [smem:[#allocation0]]
  $region66: #{tpu_custom_call.1} parent=0
    _
  %s10 = ssub.s32 1, %s8
  %s11 = scalar_select 0, %s10, %s8
  $region1: #{tpu_custom_call.1} parent=0
    #allocation4 [shape = 'u8[32768]{0}', space=vmem, size = 0x8000, scoped, tag = 'input window, operand 0, single buffered']
    #allocation5 [shape = 's32[1]{0}', space=sflag, size = 0x4, scoped, tag = 'scoped memory for tpu_custom_call.1']
    #allocation6 [shape = 's32[1]{0}', space=sflag, size = 0x4, scoped, tag = 'scoped memory for tpu_custom_call.1']
    #allocation7 [shape = 'u8[4096]{0}', space=vmem, size = 0x1000, scoped, tag = 'input window, operand 1, single buffered']
    #allocation8 [shape = 's32[1]{0}', space=sflag, size = 0x4, scoped, tag = 'scoped memory for tpu_custom_call.1']
    #allocation9 [shape = 'u8[4096]{0}', space=vmem, size = 0x1000, scoped, tag = 'input window, operand 2, single buffered']
    #allocation10 [shape = 'u8[16384]{0}', space=vmem, size = 0x4000, scoped, tag = 'input window, operand 3, single buffered']
    #allocation11 [shape = 's32[1]{0}', space=sflag, size = 0x4, scoped, tag = 'scoped memory for tpu_custom_call.1']
    #allocation12 [shape = 'u8[32768]{0}', space=vmem, size = 0x8000, scoped, tag = 'output window, operand 0, single buffered']
    #allocation13 [shape = 'u8[4096]{0}', space=vmem, size = 0x1000, scoped, tag = 'output window, operand 1, single buffered']
    #allocation14 [shape = 's32[1]{0}', space=sflag, size = 0x4, scoped, tag = 'scoped memory for tpu_custom_call.1']
    #allocation15 [shape = 'u8[4096]{0}', space=vmem, size = 0x1000, scoped, tag = 'output window, operand 2, single buffered']
    %12 = vsyncpa [#allocation5], 0
    %13 = vsyncpa [#allocation8], 0
    %14 = vsyncpa [#allocation11], 0
    %15 = vsyncpa [#allocation6], 0
    %16 = vsyncpa [#allocation14], 0
    // Predicated region
    $region2: #{tpu_custom_call.1} parent=1 // pred_check
      _
    $region3: #{tpu_custom_call.1} parent=1 // pred_check_branch
      %18 = sbr.rel (0) target = $region5
    $region4: #{tpu_custom_call.1} parent=1 // pred_region
      %20 = vsyncadd [#allocation5], 0
      %s21 = sshll.u32 %s0, 4
      %s22 = int_to_ptr.hbm [resolvable:$true] %s21
      %s23 = sshll.u32 [#allocation4], 4
      %s24 = int_to_ptr.vmem [resolvable:$true] %s23
      %29 = dma.hbm_to_vmem [thread:$0]  %s22, 1024, %s24, [#allocation5], 128, 128, 8
    $region5: #{tpu_custom_call.1} parent=1 // pred_fallthru
      _
    // Predicated region
    $region6: #{tpu_custom_call.1} parent=1 // pred_check
      _
    $region7: #{tpu_custom_call.1} parent=1 // pred_check_branch
      %31 = sbr.rel (0) target = $region9
    $region8: #{tpu_custom_call.1} parent=1 // pred_region
      %33 = vsyncadd [#allocation8], 0
      %s35 = sshll.u32 %s1, 4
      %s36 = int_to_ptr.hbm [resolvable:$true] %s35
      %s37 = sshll.u32 [#allocation7], 4
      %s38 = int_to_ptr.vmem [resolvable:$true] %s37
      %40 = dma.hbm_to_vmem [thread:$0]  %s36, 128, %s38, [#allocation8]
    $region9: #{tpu_custom_call.1} parent=1 // pred_fallthru
      _
    // Predicated region
    $region10: #{tpu_custom_call.1} parent=1 // pred_check
      _
    $region11: #{tpu_custom_call.1} parent=1 // pred_check_branch
      %42 = sbr.rel (0) target = $region13
    $region12: #{tpu_custom_call.1} parent=1 // pred_region
      %44 = vsyncadd [#allocation8], 0
      %s46 = sshll.u32 %s2, 4
      %s47 = int_to_ptr.hbm [resolvable:$true] %s46
      %s48 = sshll.u32 [#allocation9], 4
      %s49 = int_to_ptr.vmem [resolvable:$true] %s48
      %51 = dma.hbm_to_vmem [thread:$0]  %s47, 128, %s49, [#allocation8]
    $region13: #{tpu_custom_call.1} parent=1 // pred_fallthru
      _
    // Predicated region
    $region14: #{tpu_custom_call.1} parent=1 // pred_check
      _
    $region15: #{tpu_custom_call.1} parent=1 // pred_check_branch
      %53 = sbr.rel (0) target = $region17
    $region16: #{tpu_custom_call.1} parent=1 // pred_region
      %55 = vsyncadd [#allocation11], 0
      %s56 = sshll.u32 %s3, 4
      %s57 = int_to_ptr.hbm [resolvable:$true] %s56
      %s58 = sshll.u32 [#allocation10], 4
      %s59 = int_to_ptr.vmem [resolvable:$true] %s58
      %64 = dma.hbm_to_vmem [thread:$0]  %s57, 512, %s59, [#allocation11], 128, 128, 8
    $region17: #{tpu_custom_call.1} parent=1 // pred_fallthru
      _
    // Predicated region
    $region18: #{tpu_custom_call.1} parent=1 // pred_check
      _
    $region19: #{tpu_custom_call.1} parent=1 // pred_check_branch
      %66 = sbr.rel (0) target = $region21
    $region20: #{tpu_custom_call.1} parent=1 // pred_region
      %68 = dma.done [#allocation5], 1024
    $region21: #{tpu_custom_call.1} parent=1 // pred_fallthru
      _
    // Predicated region
    $region22: #{tpu_custom_call.1} parent=1 // pred_check
      _
    $region23: #{tpu_custom_call.1} parent=1 // pred_check_branch
      %70 = sbr.rel (0) target = $region25
    $region24: #{tpu_custom_call.1} parent=1 // pred_region
      %72 = dma.done [#allocation8], 128
    $region25: #{tpu_custom_call.1} parent=1 // pred_fallthru
      _
    // Predicated region
    $region26: #{tpu_custom_call.1} parent=1 // pred_check
      _
    $region27: #{tpu_custom_call.1} parent=1 // pred_check_branch
      %74 = sbr.rel (0) target = $region29
    $region28: #{tpu_custom_call.1} parent=1 // pred_region
      %76 = dma.done [#allocation8], 128
    $region29: #{tpu_custom_call.1} parent=1 // pred_fallthru
      _
    // Predicated region
    $region30: #{tpu_custom_call.1} parent=1 // pred_check
      _
    $region31: #{tpu_custom_call.1} parent=1 // pred_check_branch
      %78 = sbr.rel (0) target = $region33
    $region32: #{tpu_custom_call.1} parent=1 // pred_region
      %80 = dma.done [#allocation11], 512
    $region33: #{tpu_custom_call.1} parent=1 // pred_fallthru
      _
    %p81 = scmp.eq.s32.totalorder 0, 0
    // Predicated region
    $region34: #{tpu_custom_call.1} parent=1 // pred_check
      %p82 = pneg %p81
    $region35: #{tpu_custom_call.1} parent=1 // pred_check_branch
      %84 = sbr.rel (%p82) target = $region37
    $region36: #{tpu_custom_call.1} parent=1 // pred_region
      %v85 = vld [vmem:[#allocation7] sm:$0xff]
      %vm86 = vcmask 261120
      %87 = vst.msk [vmem:[#allocation2] sm:$0xff] %vm86, %v85
      %v88 = vld [vmem:[#allocation9] sm:$0xff]
      %89 = vst.msk [vmem:[#allocation3] sm:$0xff] %vm86, %v88
    $region37: #{tpu_custom_call.1} parent=1 // pred_fallthru
      _
    %v90 = vld [vmem:[#allocation10] sm:$0xff]
    %v91 = vld [vmem:[#allocation10 + $0x8] sm:$0xff]
    %v92 = vld [vmem:[#allocation10 + $0x10] sm:$0xff]
    %v93 = vld [vmem:[#allocation10 + $0x18] sm:$0xff]
    %v94 = vld [vmem:[#allocation2] sm:$0xff]
    %v95 = vld [vmem:[#allocation3] sm:$0xff]
    %v96 = vld [vmem:[#allocation4] sm:$0xff]
    %vm97 = vcmask 261120
    %v99 = vsel %vm97, %v94, 0
    %101 = vmatpush.msra.mxu0 0.0
    %102 = vmatpush.msra.mxu0 0.0
    %103 = vmatpush.msra.mxu0 0.0
    %104 = vmatpush.msra.mxu0 0.0
    %105 = vmatpush.msra.mxu0 0.0
    %106 = vmatpush.msra.mxu0 0.0
    %107 = vmatpush.msra.mxu0 0.0
    %108 = vmatpush.msra.mxu0 0.0
    %109 = vmatpush.msra.mxu0 0.0
    %110 = vmatpush.msra.mxu0 0.0
    %111 = vmatpush.msra.mxu0 0.0
    %112 = vmatpush.msra.mxu0 0.0
    %113 = vmatpush.msra.mxu0 %v93
    %114 = vmatpush.msra.mxu0 %v92
    %115 = vmatpush.msra.mxu0 %v91
    %116 = vmatpush.msra.mxu0 %v90
    %117 = vmatmul.f32.gmra.mxu0 %v99
    %v118 = vpop.f32.mrf.mxu0
    %v119 = vadd.f32 0.0, %v118
    %120 = vdwg.mxu0
    %v121 = vadd.f32 %v96, %v119
    %v122 = vxor.u32 %v121, 2147483648
    %v123 = vmul.f32 %v122, 1.442695
    %v124 = vpow.pop %v123
    %v125 = vadd.f32 %v124, 1.0
    %v126 = vrcp.pop %v125
    %v127 = vmul.f32 %v125, %v126
    %v128 = vsub.f32 1.0, %v127
    %v129 = vmul.f32 %v126, %v128
    %v130 = vadd.f32 %v126, %v129
    %vm131 = vweird.f32 %v125
    %vm132 = vweird.f32 %v126
    %vm133 = vmor %vm131, %vm132
    %v134 = vsel %vm133, %v126, %v130
    %v135 = vand.u32 2147483647, %v125
    %vm136 = vcmp.eq.f32.partialorder %v135, 8.507059e+37
    %v137 = vand.u32 %v125, 2147483648
    %v138 = vor.u32 1.1754944e-38, %v137
    %v139 = vsel %vm136, %v138, %v134
    %v140 = vmul.f32 1.0, %v139
    %v141 = vtanh.pop %v121
    %143 = vrot.lane.b32.xlu0 %v95, 32
    %v144 = vpop.permute.xlu0 %143
    %v146 = vmul.f32 %v140, %v144
    %148 = vrot.lane.b32.xlu0 %v141, 64
    %v149 = vpop.permute.xlu0 %148
    %v151 = vmul.f32 %v140, %v149
    %153 = vrot.lane.b32.xlu0 %v151, 32
    %v154 = vpop.permute.xlu0 %153
    %v156 = vadd.f32 %v146, %v154
    %v157 = vtanh.pop %v156
    %159 = vrot.lane.b32.xlu0 %v157, 64
    %v160 = vpop.permute.xlu0 %159
    %v162 = vmul.f32 %v140, %v160
    %164 = vrot.lane.b32.xlu0 %v162, 32
    %v165 = vpop.permute.xlu0 %164
    %167 = vst.msk [vmem:[#allocation12] sm:$0xff] %vm97, %v165
    %s168 = scalar_lea.vmem [#allocation4], 8
    %v169 = vld [vmem:[%s168] sm:$0xff]
    %v170 = vsel %vm97, %v165, 0
    %172 = vmatpush.msra.mxu0 0.0
    %173 = vmatpush.msra.mxu0 0.0
    %174 = vmatpush.msra.mxu0 0.0
    %175 = vmatpush.msra.mxu0 0.0
    %176 = vmatpush.msra.mxu0 0.0
    %177 = vmatpush.msra.mxu0 0.0
    %178 = vmatpush.msra.mxu0 0.0
    %179 = vmatpush.msra.mxu0 0.0
    %180 = vmatpush.msra.mxu0 0.0
    %181 = vmatpush.msra.mxu0 0.0
    %182 = vmatpush.msra.mxu0 0.0
    %183 = vmatpush.msra.mxu0 0.0
    %184 = vmatpush.msra.mxu0 %v93
    %185 = vmatpush.msra.mxu0 %v92
    %186 = vmatpush.msra.mxu0 %v91
    %187 = vmatpush.msra.mxu0 %v90
    %188 = vmatmul.f32.gmra.mxu0 %v170
    %v189 = vpop.f32.mrf.mxu0
    %v190 = vadd.f32 0.0, %v189
    %191 = vdwg.mxu0
    %v192 = vadd.f32 %v169, %v190
    %v193 = vxor.u32 %v192, 2147483648
    %v194 = vmul.f32 %v193, 1.442695
    %v195 = vpow.pop %v194
    %v196 = vadd.f32 %v195, 1.0
    %v197 = vrcp.pop %v196
    %v198 = vmul.f32 %v196, %v197
    %v199 = vsub.f32 1.0, %v198
    %v200 = vmul.f32 %v197, %v199
    %v201 = vadd.f32 %v197, %v200
    %vm202 = vweird.f32 %v196
    %vm203 = vweird.f32 %v197
    %vm204 = vmor %vm202, %vm203
    %v205 = vsel %vm204, %v197, %v201
    %v206 = vand.u32 2147483647, %v196
    %vm207 = vcmp.eq.f32.partialorder %v206, 8.507059e+37
    %v208 = vand.u32 %v196, 2147483648
    %v209 = vor.u32 1.1754944e-38, %v208
    %v210 = vsel %vm207, %v209, %v205
    %v211 = vmul.f32 1.0, %v210
    %v212 = vtanh.pop %v192
    %v213 = vmul.f32 %v211, %v156
    %215 = vrot.lane.b32.xlu0 %v212, 64
    %v216 = vpop.permute.xlu0 %215
    %v218 = vmul.f32 %v211, %v216
    %220 = vrot.lane.b32.xlu0 %v218, 32
    %v221 = vpop.permute.xlu0 %220
    %v223 = vadd.f32 %v213, %v221
    %v224 = vtanh.pop %v223
    %226 = vrot.lane.b32.xlu0 %v224, 64
    %v227 = vpop.permute.xlu0 %226
    %v229 = vmul.f32 %v211, %v227
    %231 = vrot.lane.b32.xlu0 %v229, 32
    %v232 = vpop.permute.xlu0 %231
    %s234 = scalar_lea.vmem [#allocation12], 8
    %235 = vst.msk [vmem:[%s234] sm:$0xff] %vm97, %v232
    %s236 = scalar_lea.vmem [#allocation4], 16
    %v237 = vld [vmem:[%s236] sm:$0xff]
    %v238 = vsel %vm97, %v232, 0
    %240 = vmatpush.msra.mxu0 0.0
    %241 = vmatpush.msra.mxu0 0.0
    %242 = vmatpush.msra.mxu0 0.0
    %243 = vmatpush.msra.mxu0 0.0
    %244 = vmatpush.msra.mxu0 0.0
    %245 = vmatpush.msra.mxu0 0.0
    %246 = vmatpush.msra.mxu0 0.0
    %247 = vmatpush.msra.mxu0 0.0
    %248 = vmatpush.msra.mxu0 0.0
    %249 = vmatpush.msra.mxu0 0.0
    %250 = vmatpush.msra.mxu0 0.0
    %251 = vmatpush.msra.mxu0 0.0
    %252 = vmatpush.msra.mxu0 %v93
    %253 = vmatpush.msra.mxu0 %v92
    %254 = vmatpush.msra.mxu0 %v91
    %255 = vmatpush.msra.mxu0 %v90
    %256 = vmatmul.f32.gmra.mxu0 %v238
    %v257 = vpop.f32.mrf.mxu0
    %v258 = vadd.f32 0.0, %v257
    %259 = vdwg.mxu0
    %v260 = vadd.f32 %v237, %v258
    %v261 = vxor.u32 %v260, 2147483648
    %v262 = vmul.f32 %v261, 1.442695
    %v263 = vpow.pop %v262
    %v264 = vadd.f32 %v263, 1.0
    %v265 = vrcp.pop %v264
    %v266 = vmul.f32 %v264, %v265
    %v267 = vsub.f32 1.0, %v266
    %v268 = vmul.f32 %v265, %v267
    %v269 = vadd.f32 %v265, %v268
    %vm270 = vweird.f32 %v264
    %vm271 = vweird.f32 %v265
    %vm272 = vmor %vm270, %vm271
    %v273 = vsel %vm272, %v265, %v269
    %v274 = vand.u32 2147483647, %v264
    %vm275 = vcmp.eq.f32.partialorder %v274, 8.507059e+37
    %v276 = vand.u32 %v264, 2147483648
    %v277 = vor.u32 1.1754944e-38, %v276
    %v278 = vsel %vm275, %v277, %v273
    %v279 = vmul.f32 1.0, %v278
    %v280 = vtanh.pop %v260
    %v281 = vmul.f32 %v279, %v223
    %283 = vrot.lane.b32.xlu0 %v280, 64
    %v284 = vpop.permute.xlu0 %283
    %v286 = vmul.f32 %v279, %v284
    %288 = vrot.lane.b32.xlu0 %v286, 32
    %v289 = vpop.permute.xlu0 %288
    %v291 = vadd.f32 %v281, %v289
    %v292 = vtanh.pop %v291
    %294 = vrot.lane.b32.xlu0 %v292, 64
    %v295 = vpop.permute.xlu0 %294
    %v297 = vmul.f32 %v279, %v295
    %299 = vrot.lane.b32.xlu0 %v297, 32
    %v300 = vpop.permute.xlu0 %299
    %s302 = scalar_lea.vmem [#allocation12], 16
    %303 = vst.msk [vmem:[%s302] sm:$0xff] %vm97, %v300
    %s304 = scalar_lea.vmem [#allocation4], 24
    %v305 = vld [vmem:[%s304] sm:$0xff]
    %v306 = vsel %vm97, %v300, 0
    %308 = vmatpush.msra.mxu0 0.0
    %309 = vmatpush.msra.mxu0 0.0
    %310 = vmatpush.msra.mxu0 0.0
    %311 = vmatpush.msra.mxu0 0.0
    %312 = vmatpush.msra.mxu0 0.0
    %313 = vmatpush.msra.mxu0 0.0
    %314 = vmatpush.msra.mxu0 0.0
    %315 = vmatpush.msra.mxu0 0.0
    %316 = vmatpush.msra.mxu0 0.0
    %317 = vmatpush.msra.mxu0 0.0
    %318 = vmatpush.msra.mxu0 0.0
    %319 = vmatpush.msra.mxu0 0.0
    %320 = vmatpush.msra.mxu0 %v93
    %321 = vmatpush.msra.mxu0 %v92
    %322 = vmatpush.msra.mxu0 %v91
    %323 = vmatpush.msra.mxu0 %v90
    %324 = vmatmul.f32.gmra.mxu0 %v306
    %v325 = vpop.f32.mrf.mxu0
    %v326 = vadd.f32 0.0, %v325
    %327 = vdwg.mxu0
    %v328 = vadd.f32 %v305, %v326
    %v329 = vxor.u32 %v328, 2147483648
    %v330 = vmul.f32 %v329, 1.442695
    %v331 = vpow.pop %v330
    %v332 = vadd.f32 %v331, 1.0
    %v333 = vrcp.pop %v332
    %v334 = vmul.f32 %v332, %v333
    %v335 = vsub.f32 1.0, %v334
    %v336 = vmul.f32 %v333, %v335
    %v337 = vadd.f32 %v333, %v336
    %vm338 = vweird.f32 %v332
    %vm339 = vweird.f32 %v333
    %vm340 = vmor %vm338, %vm339
    %v341 = vsel %vm340, %v333, %v337
    %v342 = vand.u32 2147483647, %v332
    %vm343 = vcmp.eq.f32.partialorder %v342, 8.507059e+37
    %v344 = vand.u32 %v332, 2147483648
    %v345 = vor.u32 1.1754944e-38, %v344
    %v346 = vsel %vm343, %v345, %v341
    %v347 = vmul.f32 1.0, %v346
    %v348 = vtanh.pop %v328
    %v349 = vmul.f32 %v347, %v291
    %351 = vrot.lane.b32.xlu0 %v348, 64
    %v352 = vpop.permute.xlu0 %351
    %v354 = vmul.f32 %v347, %v352
    %356 = vrot.lane.b32.xlu0 %v354, 32
    %v357 = vpop.permute.xlu0 %356
    %v359 = vadd.f32 %v349, %v357
    %v360 = vtanh.pop %v359
    %362 = vrot.lane.b32.xlu0 %v360, 64
    %v363 = vpop.permute.xlu0 %362
    %v365 = vmul.f32 %v347, %v363
    %367 = vrot.lane.b32.xlu0 %v365, 32
    %v368 = vpop.permute.xlu0 %367
    %s370 = scalar_lea.vmem [#allocation12], 24
    %371 = vst.msk [vmem:[%s370] sm:$0xff] %vm97, %v368
    %s372 = scalar_lea.vmem [#allocation4], 32
    %v373 = vld [vmem:[%s372] sm:$0xff]
    %v374 = vsel %vm97, %v368, 0
    %376 = vmatpush.msra.mxu0 0.0
    %377 = vmatpush.msra.mxu0 0.0
    %378 = vmatpush.msra.mxu0 0.0
    %379 = vmatpush.msra.mxu0 0.0
    %380 = vmatpush.msra.mxu0 0.0
    %381 = vmatpush.msra.mxu0 0.0
    %382 = vmatpush.msra.mxu0 0.0
    %383 = vmatpush.msra.mxu0 0.0
    %384 = vmatpush.msra.mxu0 0.0
    %385 = vmatpush.msra.mxu0 0.0
    %386 = vmatpush.msra.mxu0 0.0
    %387 = vmatpush.msra.mxu0 0.0
    %388 = vmatpush.msra.mxu0 %v93
    %389 = vmatpush.msra.mxu0 %v92
    %390 = vmatpush.msra.mxu0 %v91
    %391 = vmatpush.msra.mxu0 %v90
    %392 = vmatmul.f32.gmra.mxu0 %v374
    %v393 = vpop.f32.mrf.mxu0
    %v394 = vadd.f32 0.0, %v393
    %395 = vdwg.mxu0
    %v396 = vadd.f32 %v373, %v394
    %v397 = vxor.u32 %v396, 2147483648
    %v398 = vmul.f32 %v397, 1.442695
    %v399 = vpow.pop %v398
    %v400 = vadd.f32 %v399, 1.0
    %v401 = vrcp.pop %v400
    %v402 = vmul.f32 %v400, %v401
    %v403 = vsub.f32 1.0, %v402
    %v404 = vmul.f32 %v401, %v403
    %v405 = vadd.f32 %v401, %v404
    %vm406 = vweird.f32 %v400
    %vm407 = vweird.f32 %v401
    %vm408 = vmor %vm406, %vm407
    %v409 = vsel %vm408, %v401, %v405
    %v410 = vand.u32 2147483647, %v400
    %vm411 = vcmp.eq.f32.partialorder %v410, 8.507059e+37
    %v412 = vand.u32 %v400, 2147483648
    %v413 = vor.u32 1.1754944e-38, %v412
    %v414 = vsel %vm411, %v413, %v409
    %v415 = vmul.f32 1.0, %v414
    %v416 = vtanh.pop %v396
    %v417 = vmul.f32 %v415, %v359
    %419 = vrot.lane.b32.xlu0 %v416, 64
    %v420 = vpop.permute.xlu0 %419
    %v422 = vmul.f32 %v415, %v420
    %424 = vrot.lane.b32.xlu0 %v422, 32
    %v425 = vpop.permute.xlu0 %424
    %v427 = vadd.f32 %v417, %v425
    %v428 = vtanh.pop %v427
    %430 = vrot.lane.b32.xlu0 %v428, 64
    %v431 = vpop.permute.xlu0 %430
    %v433 = vmul.f32 %v415, %v431
    %435 = vrot.lane.b32.xlu0 %v433, 32
    %v436 = vpop.permute.xlu0 %435
    %s438 = scalar_lea.vmem [#allocation12], 32
    %439 = vst.msk [vmem:[%s438] sm:$0xff] %vm97, %v436
    %s440 = scalar_lea.vmem [#allocation4], 40
    %v441 = vld [vmem:[%s440] sm:$0xff]
    %v442 = vsel %vm97, %v436, 0
    %444 = vmatpush.msra.mxu0 0.0
    %445 = vmatpush.msra.mxu0 0.0
    %446 = vmatpush.msra.mxu0 0.0
    %447 = vmatpush.msra.mxu0 0.0
    %448 = vmatpush.msra.mxu0 0.0
    %449 = vmatpush.msra.mxu0 0.0
    %450 = vmatpush.msra.mxu0 0.0
    %451 = vmatpush.msra.mxu0 0.0
    %452 = vmatpush.msra.mxu0 0.0
    %453 = vmatpush.msra.mxu0 0.0
    %454 = vmatpush.msra.mxu0 0.0
    %455 = vmatpush.msra.mxu0 0.0
    %456 = vmatpush.msra.mxu0 %v93
    %457 = vmatpush.msra.mxu0 %v92
    %458 = vmatpush.msra.mxu0 %v91
    %459 = vmatpush.msra.mxu0 %v90
    %460 = vmatmul.f32.gmra.mxu0 %v442
    %v461 = vpop.f32.mrf.mxu0
    %v462 = vadd.f32 0.0, %v461
    %463 = vdwg.mxu0
    %v464 = vadd.f32 %v441, %v462
    %v465 = vxor.u32 %v464, 2147483648
    %v466 = vmul.f32 %v465, 1.442695
    %v467 = vpow.pop %v466
    %v468 = vadd.f32 %v467, 1.0
    %v469 = vrcp.pop %v468
    %v470 = vmul.f32 %v468, %v469
    %v471 = vsub.f32 1.0, %v470
    %v472 = vmul.f32 %v469, %v471
    %v473 = vadd.f32 %v469, %v472
    %vm474 = vweird.f32 %v468
    %vm475 = vweird.f32 %v469
    %vm476 = vmor %vm474, %vm475
    %v477 = vsel %vm476, %v469, %v473
    %v478 = vand.u32 2147483647, %v468
    %vm479 = vcmp.eq.f32.partialorder %v478, 8.507059e+37
    %v480 = vand.u32 %v468, 2147483648
    %v481 = vor.u32 1.1754944e-38, %v480
    %v482 = vsel %vm479, %v481, %v477
    %v483 = vmul.f32 1.0, %v482
    %v484 = vtanh.pop %v464
    %v485 = vmul.f32 %v483, %v427
    %487 = vrot.lane.b32.xlu0 %v484, 64
    %v488 = vpop.permute.xlu0 %487
    %v490 = vmul.f32 %v483, %v488
    %492 = vrot.lane.b32.xlu0 %v490, 32
    %v493 = vpop.permute.xlu0 %492
    %v495 = vadd.f32 %v485, %v493
    %v496 = vtanh.pop %v495
    %498 = vrot.lane.b32.xlu0 %v496, 64
    %v499 = vpop.permute.xlu0 %498
    %v501 = vmul.f32 %v483, %v499
    %503 = vrot.lane.b32.xlu0 %v501, 32
    %v504 = vpop.permute.xlu0 %503
    %s506 = scalar_lea.vmem [#allocation12], 40
    %507 = vst.msk [vmem:[%s506] sm:$0xff] %vm97, %v504
    %s508 = scalar_lea.vmem [#allocation4], 48
    %v509 = vld [vmem:[%s508] sm:$0xff]
    %v510 = vsel %vm97, %v504, 0
    %512 = vmatpush.msra.mxu0 0.0
    %513 = vmatpush.msra.mxu0 0.0
    %514 = vmatpush.msra.mxu0 0.0
    %515 = vmatpush.msra.mxu0 0.0
    %516 = vmatpush.msra.mxu0 0.0
    %517 = vmatpush.msra.mxu0 0.0
    %518 = vmatpush.msra.mxu0 0.0
    %519 = vmatpush.msra.mxu0 0.0
    %520 = vmatpush.msra.mxu0 0.0
    %521 = vmatpush.msra.mxu0 0.0
    %522 = vmatpush.msra.mxu0 0.0
    %523 = vmatpush.msra.mxu0 0.0
    %524 = vmatpush.msra.mxu0 %v93
    %525 = vmatpush.msra.mxu0 %v92
    %526 = vmatpush.msra.mxu0 %v91
    %527 = vmatpush.msra.mxu0 %v90
    %528 = vmatmul.f32.gmra.mxu0 %v510
    %v529 = vpop.f32.mrf.mxu0
    %v530 = vadd.f32 0.0, %v529
    %531 = vdwg.mxu0
    %v532 = vadd.f32 %v509, %v530
    %v533 = vxor.u32 %v532, 2147483648
    %v534 = vmul.f32 %v533, 1.442695
    %v535 = vpow.pop %v534
    %v536 = vadd.f32 %v535, 1.0
    %v537 = vrcp.pop %v536
    %v538 = vmul.f32 %v536, %v537
    %v539 = vsub.f32 1.0, %v538
    %v540 = vmul.f32 %v537, %v539
    %v541 = vadd.f32 %v537, %v540
    %vm542 = vweird.f32 %v536
    %vm543 = vweird.f32 %v537
    %vm544 = vmor %vm542, %vm543
    %v545 = vsel %vm544, %v537, %v541
    %v546 = vand.u32 2147483647, %v536
    %vm547 = vcmp.eq.f32.partialorder %v546, 8.507059e+37
    %v548 = vand.u32 %v536, 2147483648
    %v549 = vor.u32 1.1754944e-38, %v548
    %v550 = vsel %vm547, %v549, %v545
    %v551 = vmul.f32 1.0, %v550
    %v552 = vtanh.pop %v532
    %v553 = vmul.f32 %v551, %v495
    %555 = vrot.lane.b32.xlu0 %v552, 64
    %v556 = vpop.permute.xlu0 %555
    %v558 = vmul.f32 %v551, %v556
    %560 = vrot.lane.b32.xlu0 %v558, 32
    %v561 = vpop.permute.xlu0 %560
    %v563 = vadd.f32 %v553, %v561
    %v564 = vtanh.pop %v563
    %566 = vrot.lane.b32.xlu0 %v564, 64
    %v567 = vpop.permute.xlu0 %566
    %v569 = vmul.f32 %v551, %v567
    %571 = vrot.lane.b32.xlu0 %v569, 32
    %v572 = vpop.permute.xlu0 %571
    %s574 = scalar_lea.vmem [#allocation12], 48
    %575 = vst.msk [vmem:[%s574] sm:$0xff] %vm97, %v572
    %s576 = scalar_lea.vmem [#allocation4], 56
    %v577 = vld [vmem:[%s576] sm:$0xff]
    %v578 = vsel %vm97, %v572, 0
    %580 = vmatpush.msra.mxu0 0.0
    %581 = vmatpush.msra.mxu0 0.0
    %582 = vmatpush.msra.mxu0 0.0
    %583 = vmatpush.msra.mxu0 0.0
    %584 = vmatpush.msra.mxu0 0.0
    %585 = vmatpush.msra.mxu0 0.0
    %586 = vmatpush.msra.mxu0 0.0
    %587 = vmatpush.msra.mxu0 0.0
    %588 = vmatpush.msra.mxu0 0.0
    %589 = vmatpush.msra.mxu0 0.0
    %590 = vmatpush.msra.mxu0 0.0
    %591 = vmatpush.msra.mxu0 0.0
    %592 = vmatpush.msra.mxu0 %v93
    %593 = vmatpush.msra.mxu0 %v92
    %594 = vmatpush.msra.mxu0 %v91
    %595 = vmatpush.msra.mxu0 %v90
    %596 = vmatmul.f32.gmra.mxu0 %v578
    %v597 = vpop.f32.mrf.mxu0
    %v598 = vadd.f32 0.0, %v597
    %599 = vdwg.mxu0
    %v600 = vadd.f32 %v577, %v598
    %v601 = vxor.u32 %v600, 2147483648
    %v602 = vmul.f32 %v601, 1.442695
    %v603 = vpow.pop %v602
    %v604 = vadd.f32 %v603, 1.0
    %v605 = vrcp.pop %v604
    %v606 = vmul.f32 %v604, %v605
    %v607 = vsub.f32 1.0, %v606
    %v608 = vmul.f32 %v605, %v607
    %v609 = vadd.f32 %v605, %v608
    %vm610 = vweird.f32 %v604
    %vm611 = vweird.f32 %v605
    %vm612 = vmor %vm610, %vm611
    %v613 = vsel %vm612, %v605, %v609
    %v614 = vand.u32 2147483647, %v604
    %vm615 = vcmp.eq.f32.partialorder %v614, 8.507059e+37
    %v616 = vand.u32 %v604, 2147483648
    %v617 = vor.u32 1.1754944e-38, %v616
    %v618 = vsel %vm615, %v617, %v613
    %v619 = vmul.f32 1.0, %v618
    %v620 = vtanh.pop %v600
    %v621 = vmul.f32 %v619, %v563
    %623 = vrot.lane.b32.xlu0 %v620, 64
    %v624 = vpop.permute.xlu0 %623
    %v626 = vmul.f32 %v619, %v624
    %628 = vrot.lane.b32.xlu0 %v626, 32
    %v629 = vpop.permute.xlu0 %628
    %v631 = vadd.f32 %v621, %v629
    %v632 = vtanh.pop %v631
    %634 = vrot.lane.b32.xlu0 %v632, 64
    %v635 = vpop.permute.xlu0 %634
    %v637 = vmul.f32 %v619, %v635
    %639 = vrot.lane.b32.xlu0 %v637, 32
    %v640 = vpop.permute.xlu0 %639
    %s642 = scalar_lea.vmem [#allocation12], 56
    %643 = vst.msk [vmem:[%s642] sm:$0xff] %vm97, %v640
    %644 = vst.msk [vmem:[#allocation2] sm:$0xff] %vm97, %v640
    %646 = vrot.lane.b32.xlu0 %v631, 96
    %v647 = vpop.permute.xlu0 %646
    %649 = vst.msk [vmem:[#allocation3] sm:$0xff] %vm97, %v647
    // Predicated region
    $region38: #{tpu_custom_call.1} parent=1 // pred_check
      %p650 = pneg %p81
    $region39: #{tpu_custom_call.1} parent=1 // pred_check_branch
      %652 = sbr.rel (%p650) target = $region41
    $region40: #{tpu_custom_call.1} parent=1 // pred_region
      %653 = vst.msk [vmem:[#allocation13] sm:$0xff] %vm97, %v640
      %654 = vst.msk [vmem:[#allocation15] sm:$0xff] %vm97, %v647
    $region41: #{tpu_custom_call.1} parent=1 // pred_fallthru
      _
    // Predicated region
    $region42: #{tpu_custom_call.1} parent=1 // pred_check
      _
    $region43: #{tpu_custom_call.1} parent=1 // pred_check_branch
      %656 = sbr.rel (0) target = $region45
    $region44: #{tpu_custom_call.1} parent=1 // pred_region
      %658 = vsyncadd [#allocation6], 0
      %s659 = sshll.u32 [#allocation12], 4
      %s660 = int_to_ptr.vmem [resolvable:$true] %s659
      %s661 = sshll.u32 %s4, 4
      %s662 = int_to_ptr.hbm [resolvable:$true] %s661
      %667 = dma.vmem_to_hbm [thread:$0]  %s660, 1024, %s662, [#allocation6], 128, 128, 8
    $region45: #{tpu_custom_call.1} parent=1 // pred_fallthru
      _
    // Predicated region
    $region46: #{tpu_custom_call.1} parent=1 // pred_check
      _
    $region47: #{tpu_custom_call.1} parent=1 // pred_check_branch
      %669 = sbr.rel (0) target = $region49
    $region48: #{tpu_custom_call.1} parent=1 // pred_region
      %671 = vsyncadd [#allocation14], 0
      %s673 = sshll.u32 [#allocation13], 4
      %s674 = int_to_ptr.vmem [resolvable:$true] %s673
      %s675 = sshll.u32 %s5, 4
      %s676 = int_to_ptr.hbm [resolvable:$true] %s675
      %678 = dma.vmem_to_hbm [thread:$0]  %s674, 128, %s676, [#allocation14]
    $region49: #{tpu_custom_call.1} parent=1 // pred_fallthru
      _
    // Predicated region
    $region50: #{tpu_custom_call.1} parent=1 // pred_check
      _
    $region51: #{tpu_custom_call.1} parent=1 // pred_check_branch
      %680 = sbr.rel (0) target = $region53
    $region52: #{tpu_custom_call.1} parent=1 // pred_region
      %682 = vsyncadd [#allocation14], 0
      %s684 = sshll.u32 [#allocation15], 4
      %s685 = int_to_ptr.vmem [resolvable:$true] %s684
      %s686 = sshll.u32 %s6, 4
      %s687 = int_to_ptr.hbm [resolvable:$true] %s686
      %689 = dma.vmem_to_hbm [thread:$0]  %s685, 128, %s687, [#allocation14]
    $region53: #{tpu_custom_call.1} parent=1 // pred_fallthru
      _
    // Predicated region
    $region54: #{tpu_custom_call.1} parent=1 // pred_check
      _
    $region55: #{tpu_custom_call.1} parent=1 // pred_check_branch
      %691 = sbr.rel (0) target = $region57
    $region56: #{tpu_custom_call.1} parent=1 // pred_region
      %693 = dma.done [#allocation6], 1024
    $region57: #{tpu_custom_call.1} parent=1 // pred_fallthru
      _
    // Predicated region
    $region58: #{tpu_custom_call.1} parent=1 // pred_check
      _
    $region59: #{tpu_custom_call.1} parent=1 // pred_check_branch
      %695 = sbr.rel (0) target = $region61
    $region60: #{tpu_custom_call.1} parent=1 // pred_region
      %697 = dma.done [#allocation14], 128
    $region61: #{tpu_custom_call.1} parent=1 // pred_fallthru
      _
    // Predicated region
    $region62: #{tpu_custom_call.1} parent=1 // pred_check
      _
    $region63: #{tpu_custom_call.1} parent=1 // pred_check_branch
      %699 = sbr.rel (0) target = $region65
    $region64: #{tpu_custom_call.1} parent=1 // pred_region
      %701 = dma.done [#allocation14], 128
    $region65: #{tpu_custom_call.1} parent=1 // pred_fallthru
      _
    %702 = vsyncpa [#allocation5], 1
    %703 = vsyncpa [#allocation8], 1
    %704 = vsyncpa [#allocation11], 1
    %705 = vsyncpa [#allocation6], 1
    %706 = vsyncpa [#allocation14], 1

</llo_original>
